<compile_context>
chip_gen: v7x
topology: tpu7x:2x2x1
jax: 0.10.0
libtpu: 0.0.40
codegen_flags: <defaults>
</compile_context>

<pallas_src>
import math
import jax
import jax.numpy as jnp
from jax.experimental import pallas as pl
from jax.experimental.pallas import tpu as pltpu


def _round_up(x, m):
    return (x + m - 1) // m * m


# ----------------------------------------------------------------------------
# Pallas kernel 1: fused RPNHead
#   im2col(3x3) matmul (K = 9*C, padded) -> bias + ReLU
#   -> single fused 1x1 matmul producing [cls | box] (lane-padded to 128)
# ----------------------------------------------------------------------------
def rpn_head_kernel(p_ref, w1_ref, b1_ref, w2_ref, b2_ref, out_ref):
    # p_ref  : (1, TM, Kp)   bf16  im2col patches for TM spatial positions
    # w1_ref : (Kp, 128)     bf16  3x3 conv weight (tap-major, channel padded)
    # b1_ref : (1, 128)      f32
    # w2_ref : (128, 128)    bf16  fused [cls | box] 1x1 weight (lane padded)
    # b2_ref : (1, 128)      f32
    # out_ref: (1, TM, 128)  f32   columns [0:A]=logits, [A:5A]=box deltas
    t = jnp.dot(p_ref[0], w1_ref[...], preferred_element_type=jnp.float32)
    t = jnp.maximum(t + b1_ref[...], 0.0)                 # bias + ReLU in f32
    y = jnp.dot(t.astype(jnp.bfloat16), w2_ref[...],
                preferred_element_type=jnp.float32) + b2_ref[...]
    out_ref[0] = y.astype(out_ref.dtype)


def rpn_head_pallas(features_nchw, w_conv_pt, b_conv, w_cls_pt, b_cls,
                    w_box_pt, b_box, tile_rows=128):
    """Runs the RPNHead on one feature level.

    features_nchw: (B, C, H, W) float32 (PyTorch NCHW convention)
    Returns (logits_flat (B*H*W*A, 1), bbox_flat (B*H*W*A, 4)) matching the
    PyTorch permute(0,2,3,1) / permute(0,3,4,1,2) flattening.
    """
    B, C, H, W = features_nchw.shape
    A = w_cls_pt.shape[0]
    HW = H * W

    # NHWC + spatial zero padding for the 3x3 conv.
    x = jnp.transpose(features_nchw, (0, 2, 3, 1))
    x_pad = jnp.pad(x, ((0, 0), (1, 1), (1, 1), (0, 0)))

    # im2col: (B, H*W, 9*C), tap-major (ky, kx), channel fastest.
    taps = []
    for ky in range(3):
        for kx in range(3):
            taps.append(x_pad[:, ky:ky + H, kx:kx + W, :].reshape(B, HW, C))
    patches = jnp.concatenate(taps, axis=-1)

    K = 9 * C
    Kp = _round_up(K, 128)        # padded contraction dim
    Cp = 128                      # padded hidden width (>= C), lane dense
    Np = 128                      # padded fused head output width (>= 5A)
    assert C <= Cp and 5 * A <= Np, "demo assumes C<=128 and 5*A<=128"

    TM = tile_rows
    HWp = _round_up(HW, TM)
    patches = jnp.pad(patches, ((0, 0), (0, HWp - HW), (0, Kp - K)))
    patches = patches.astype(jnp.bfloat16)

    # 3x3 conv weight (Cout, Cin, kh, kw) -> (kh*kw*Cin, Cout), pad to (Kp, Cp)
    w1 = jnp.transpose(w_conv_pt, (2, 3, 1, 0)).reshape(K, C)
    w1 = jnp.pad(w1, ((0, Kp - K), (0, Cp - C))).astype(jnp.bfloat16)
    b1 = jnp.pad(b_conv, (0, Cp - C)).reshape(1, Cp).astype(jnp.float32)

    # Fused cls/box 1x1 weights: (C, A) ++ (C, 4A) -> (C, 5A), pad to (Cp, Np)
    w_cls = jnp.transpose(w_cls_pt[:, :, 0, 0], (1, 0))
    w_box = jnp.transpose(w_box_pt[:, :, 0, 0], (1, 0))
    w2 = jnp.concatenate([w_cls, w_box], axis=1)
    w2 = jnp.pad(w2, ((0, Cp - C), (0, Np - 5 * A))).astype(jnp.bfloat16)
    b2 = jnp.pad(jnp.concatenate([b_cls, b_box]), (0, Np - 5 * A))
    b2 = b2.reshape(1, Np).astype(jnp.float32)

    # Grid over (batch, row tiles): many pipeline steps, bounded VMEM per step.
    # (For realistic FPN levels set vmem_limit_bytes / smaller TM on v7x.)
    out = pl.pallas_call(
        rpn_head_kernel,
        out_shape=jax.ShapeDtypeStruct((B, HWp, Np), jnp.float32),
        grid_spec=pltpu.PrefetchScalarGridSpec(
            num_scalar_prefetch=0,
            grid=(B, HWp // TM),
            in_specs=[
                pl.BlockSpec((1, TM, Kp), lambda b, m: (b, m, 0)),
                pl.BlockSpec((Kp, Cp), lambda b, m: (0, 0)),
                pl.BlockSpec((1, Cp), lambda b, m: (0, 0)),
                pl.BlockSpec((Cp, Np), lambda b, m: (0, 0)),
                pl.BlockSpec((1, Np), lambda b, m: (0, 0)),
            ],
            out_specs=pl.BlockSpec((1, TM, Np), lambda b, m: (b, m, 0)),
        ),
        compiler_params=pltpu.CompilerParams(
            dimension_semantics=("parallel", "parallel")),
    )(patches, w1, b1, w2, b2)

    head = out[:, :HW, :]
    # Equivalent to the PyTorch flattening:
    #   logits  : view(N,A,H,W).permute(0,2,3,1).reshape(N,-1,1)   -> (h,w,a)
    #   bbox_reg: view(N,A,4,H,W).permute(0,3,4,1,2).reshape(N,-1,4)
    logits_flat = head[:, :, :A].reshape(-1, 1)
    bbox_flat = head[:, :, A:5 * A].reshape(B, HW, A, 4).reshape(-1, 4)
    return logits_flat, bbox_flat


# ----------------------------------------------------------------------------
# Pallas kernel 2: BoxCoder.decode (weights = (1, 1, 1, 1)), lane-dense (4, N)
# ----------------------------------------------------------------------------
_BBOX_XFORM_CLIP = math.log(1000.0 / 16.0)


def box_decode_kernel(d_ref, a_ref, o_ref):
    d = d_ref[...]          # (4, CH)  rows: dx, dy, dw, dh
    a = a_ref[...]          # (4, CH)  rows: x1, y1, x2, y2
    widths = a[2:3] - a[0:1]
    heights = a[3:4] - a[1:2]
    ctr_x = a[0:1] + 0.5 * widths
    ctr_y = a[1:2] + 0.5 * heights

    dx = d[0:1]
    dy = d[1:2]
    dw = jnp.minimum(d[2:3], _BBOX_XFORM_CLIP)
    dh = jnp.minimum(d[3:4], _BBOX_XFORM_CLIP)

    pred_ctr_x = dx * widths + ctr_x
    pred_ctr_y = dy * heights + ctr_y
    pred_w = jnp.exp(dw) * widths
    pred_h = jnp.exp(dh) * heights

    o_ref[...] = jnp.concatenate([
        pred_ctr_x - 0.5 * pred_w,
        pred_ctr_y - 0.5 * pred_h,
        pred_ctr_x + 0.5 * pred_w,
        pred_ctr_y + 0.5 * pred_h,
    ], axis=0).astype(o_ref.dtype)


def box_decode_pallas(deltas, anchors, chunk=512):
    """deltas/anchors: (N, 4) f32.  Runs lane-dense in a (4, N) layout."""
    N = deltas.shape[0]
    chunk = min(chunk, _round_up(N, 128))
    Np = _round_up(N, chunk)
    d_t = jnp.pad(deltas.astype(jnp.float32).T, ((0, 0), (0, Np - N)))
    a_t = jnp.pad(anchors.astype(jnp.float32).T, ((0, 0), (0, Np - N)))

    out = pl.pallas_call(
        box_decode_kernel,
        out_shape=jax.ShapeDtypeStruct((4, Np), jnp.float32),
        grid_spec=pltpu.PrefetchScalarGridSpec(
            num_scalar_prefetch=0,
            grid=(Np // chunk,),
            in_specs=[pl.BlockSpec((4, chunk), lambda i: (0, i)),
                      pl.BlockSpec((4, chunk), lambda i: (0, i))],
            out_specs=pl.BlockSpec((4, chunk), lambda i: (0, i)),
        ),
        compiler_params=pltpu.CompilerParams(
            dimension_semantics=("parallel",)),
    )(d_t, a_t)
    return out[:, :N].T


# ----------------------------------------------------------------------------
# Plain-JAX glue: anchor generation, proposal filtering
# ----------------------------------------------------------------------------
def generate_anchors(feat_h, feat_w, stride, size, ratios, octaves):
    """Anchors ordered as [num_shifts(h,w-major), num_ratios, 4].reshape(-1,4)."""
    base = []
    for o in octaves:
        for r in ratios:
            s = float(size) * float(o)
            w = s * (1.0 / r) ** 0.5
            h = s * r ** 0.5
            base.append([-w / 2.0, -h / 2.0, w / 2.0, h / 2.0])
    base = jnp.asarray(base, jnp.float32)                      # (A, 4)
    shift_x = jnp.arange(feat_w, dtype=jnp.float32) * stride
    shift_y = jnp.arange(feat_h, dtype=jnp.float32) * stride
    sy, sx = jnp.meshgrid(shift_y, shift_x, indexing="ij")
    shifts = jnp.stack([sx.ravel(), sy.ravel(), sx.ravel(), sy.ravel()],
                       axis=1)                                 # (H*W, 4)
    anchors = (shifts[:, None, :] + base[None, :, :]).reshape(-1, 4)
    return anchors


def filter_proposals(proposals, logits, image_shapes, num_anchors_per_level,
                     pre_nms_top_n, post_nms_top_n, min_size):
    B = proposals.shape[0]
    scores = jax.lax.stop_gradient(logits).reshape(B, -1)
    assert scores.shape[1] == sum(num_anchors_per_level)

    # Single feature level in this synthetic setup -> per-level top-k is the
    # same as a global top-k.
    top_k = min(pre_nms_top_n, scores.shape[1])
    top_scores, top_idx = jax.lax.top_k(scores, top_k)
    top_boxes = jnp.take_along_axis(proposals, top_idx[:, :, None], axis=1)

    # Vectorized clip + small-box mask over the whole batch.
    shapes = jnp.asarray(image_shapes, jnp.float32)            # (B, 2) (h, w)
    img_h = shapes[:, 0][:, None]
    img_w = shapes[:, 1][:, None]
    x1 = jnp.clip(top_boxes[..., 0], 0.0, img_w)
    y1 = jnp.clip(top_boxes[..., 1], 0.0, img_h)
    x2 = jnp.clip(top_boxes[..., 2], 0.0, img_w)
    y2 = jnp.clip(top_boxes[..., 3], 0.0, img_h)
    boxes = jnp.stack([x1, y1, x2, y2], axis=-1)               # (B, K, 4)
    keep = ((x2 - x1) >= min_size) & ((y2 - y1) >= min_size)
    sc = jnp.where(keep, top_scores, -jnp.inf)

    # TODO(synk): batched_nms (data-dependent variable-length output) has no
    # clean static-shape Pallas/JAX equivalent; pre-NMS top proposals returned.
    n = min(post_nms_top_n, top_k)
    boxes = boxes[:, :n]
    sc = sc[:, :n]
    return [boxes[i] for i in range(B)], [sc[i] for i in range(B)]


def rpn_forward(images, features_nchw, image_metas, params,
                ratios=(0.5, 1.0, 2.0), octaves=(1,), anchor_size=32,
                pre_nms_top_n=1000, post_nms_top_n=1000, min_size=0.001):
    """Inference-mode RPN.forward (losses path is training-only)."""
    B, C, H, W = features_nchw.shape
    A = len(ratios) * len(octaves)
    img_h = images.shape[2]
    stride = img_h // H

    logits_flat, bbox_flat = rpn_head_pallas(
        features_nchw, params["w_conv"], params["b_conv"],
        params["w_cls"], params["b_cls"], params["w_box"], params["b_box"])

    anchors = generate_anchors(H, W, stride, anchor_size, ratios, octaves)
    num_anchors = anchors.shape[0]
    num_anchors_per_level = [A * H * W]
    assert sum(num_anchors_per_level) == num_anchors, \
        "Num of anchors does not match with logits."

    anchors_batched = jnp.tile(anchors, (B, 1))
    proposals = box_decode_pallas(jax.lax.stop_gradient(bbox_flat),
                                  anchors_batched).reshape(B, -1, 4)

    batch_boxes, batch_scores = filter_proposals(
        proposals, logits_flat, image_metas["ori_sizes"],
        num_anchors_per_level, pre_nms_top_n, post_nms_top_n, min_size)

    # TODO(synk): training branch (Assigner / BalancedSampler / losses) not
    # implemented here (data-dependent sampling, no clean Pallas mapping).
    return dict(proposals=batch_boxes, logits=batch_scores, losses={})


# ----------------------------------------------------------------------------
if __name__ == "__main__":
    key = jax.random.PRNGKey(0)
    B, C, H, W = 2, 32, 16, 16
    ratios, octaves = (0.5, 1.0, 2.0), (1,)
    A = len(ratios) * len(octaves)
    img_h = img_w = 64

    k_feat, k1, k2, k3 = jax.random.split(key, 4)
    features_nchw = jax.random.normal(k_feat, (B, C, H, W), jnp.float32)
    images = jnp.zeros((B, 3, img_h, img_w), jnp.float32)
    image_metas = {"ori_sizes": [(img_h, img_w)] * B}

    # RPNHead parameters (PyTorch init: normal(std=0.01), bias=0)
    params = {
        "w_conv": 0.01 * jax.random.normal(k1, (C, C, 3, 3), jnp.float32),
        "b_conv": jnp.zeros((C,), jnp.float32),
        "w_cls": 0.01 * jax.random.normal(k2, (A, C, 1, 1), jnp.float32),
        "b_cls": jnp.zeros((A,), jnp.float32),
        "w_box": 0.01 * jax.random.normal(k3, (4 * A, C, 1, 1), jnp.float32),
        "b_box": jnp.zeros((4 * A,), jnp.float32),
    }

    out = rpn_forward(images, features_nchw, image_metas, params,
                      ratios=ratios, octaves=octaves, anchor_size=32)
    jax.block_until_ready(out["proposals"])
    jax.block_until_ready(out["logits"])
    print("KERNEL_OK")
</pallas_src>

<mosaic_0001>
module attributes {stable_mosaic.version = 11 : i64} {
  func.func @rpn_head_kernel(%arg0: i32, %arg1: i32, %arg2: memref<1x128x384xbf16, #tpu.memory_space<vmem>>, %arg3: memref<384x128xbf16, #tpu.memory_space<vmem>>, %arg4: memref<1x128xf32, #tpu.memory_space<vmem>>, %arg5: memref<128x128xbf16, #tpu.memory_space<vmem>>, %arg6: memref<1x128xf32, #tpu.memory_space<vmem>>, %arg7: memref<1x128x128xf32, #tpu.memory_space<vmem>>) attributes {dimension_semantics = [#tpu.dimension_semantics<parallel>, #tpu.dimension_semantics<parallel>], iteration_bounds = array<i64: 2, 2>, scalar_prefetch = 0 : i64, scratch_operands = 0 : i64, tpu.core_type = #tpu.core_type<tc>, window_params = [{transform_indices = @transform_0, window_bounds = array<i64: 1, 128, 384>}, {pipeline_mode = #tpu.pipeline_mode<synchronous>, transform_indices = @transform_1, window_bounds = array<i64: 384, 128>}, {pipeline_mode = #tpu.pipeline_mode<synchronous>, transform_indices = @transform_2, window_bounds = array<i64: 1, 128>}, {pipeline_mode = #tpu.pipeline_mode<synchronous>, transform_indices = @transform_3, window_bounds = array<i64: 128, 128>}, {pipeline_mode = #tpu.pipeline_mode<synchronous>, transform_indices = @transform_4, window_bounds = array<i64: 1, 128>}, {transform_indices = @transform_5, window_bounds = array<i64: 1, 128, 128>}]} {
    %c0 = arith.constant 0 : index
    %c0_0 = arith.constant 0 : index
    %c0_1 = arith.constant 0 : index
    %0 = vector.load %arg2[%c0, %c0_0, %c0_1] : memref<1x128x384xbf16, #tpu.memory_space<vmem>>, vector<1x128x384xbf16>
    %1 = vector.shape_cast %0 : vector<1x128x384xbf16> to vector<128x384xbf16>
    %c0_2 = arith.constant 0 : index
    %c0_3 = arith.constant 0 : index
    %2 = vector.load %arg3[%c0_2, %c0_3] : memref<384x128xbf16, #tpu.memory_space<vmem>>, vector<384x128xbf16>
    %cst = arith.constant dense<0.000000e+00> : vector<128x128xf32>
    %3 = tpu.matmul %1, %2, %cst {dimension_numbers = #tpu.dot_dimension_numbers<[1], [0], [0], [1], [0, 0, 1, 1], [], []>} : vector<128x384xbf16>, vector<384x128xbf16>, vector<128x128xf32> -> vector<128x128xf32>
    %c0_4 = arith.constant 0 : index
    %c0_5 = arith.constant 0 : index
    %4 = vector.load %arg4[%c0_4, %c0_5] : memref<1x128xf32, #tpu.memory_space<vmem>>, vector<1x128xf32>
    %5 = vector.broadcast %4 : vector<1x128xf32> to vector<128x128xf32>
    %6 = arith.addf %3, %5 : vector<128x128xf32>
    %cst_6 = arith.constant 0.000000e+00 : f32
    %7 = vector.broadcast %cst_6 : f32 to vector<128x128xf32>
    %8 = arith.maximumf %6, %7 : vector<128x128xf32>
    %9 = arith.truncf %8 : vector<128x128xf32> to vector<128x128xbf16>
    %c0_7 = arith.constant 0 : index
    %c0_8 = arith.constant 0 : index
    %10 = vector.load %arg5[%c0_7, %c0_8] : memref<128x128xbf16, #tpu.memory_space<vmem>>, vector<128x128xbf16>
    %cst_9 = arith.constant dense<0.000000e+00> : vector<128x128xf32>
    %11 = tpu.matmul %9, %10, %cst_9 {dimension_numbers = #tpu.dot_dimension_numbers<[1], [0], [0], [1], [0, 0, 1, 1], [], []>} : vector<128x128xbf16>, vector<128x128xbf16>, vector<128x128xf32> -> vector<128x128xf32>
    %c0_10 = arith.constant 0 : index
    %c0_11 = arith.constant 0 : index
    %12 = vector.load %arg6[%c0_10, %c0_11] : memref<1x128xf32, #tpu.memory_space<vmem>>, vector<1x128xf32>
    %13 = vector.broadcast %12 : vector<1x128xf32> to vector<128x128xf32>
    %14 = arith.addf %11, %13 : vector<128x128xf32>
    %c0_12 = arith.constant 0 : index
    %c0_13 = arith.constant 0 : index
    %c0_14 = arith.constant 0 : index
    %15 = vector.load %arg7[%c0_12, %c0_13, %c0_14] : memref<1x128x128xf32, #tpu.memory_space<vmem>>, vector<1x128x128xf32>
    %16 = vector.shape_cast %15 : vector<1x128x128xf32> to vector<128x128xf32>
    %17 = vector.shape_cast %14 : vector<128x128xf32> to vector<1x128x128xf32>
    tpu.vector_store %arg7[%c0_12, %c0_13, %c0_14], %17 {strides = array<i32>} : memref<1x128x128xf32, #tpu.memory_space<vmem>>, vector<1x128x128xf32>,
    return
  }
  func.func @transform_0(%arg0: i32, %arg1: i32) -> (i32, i32, i32) {
    %c0_i32 = arith.constant 0 : i32
    %c0_i32_0 = arith.constant 0 : i32
    return %arg0, %arg1, %c0_i32 : i32, i32, i32
  }
  func.func @transform_1(%arg0: i32, %arg1: i32) -> (i32, i32) {
    %c0_i32 = arith.constant 0 : i32
    %c0_i32_0 = arith.constant 0 : i32
    %c0_i32_1 = arith.constant 0 : i32
    return %c0_i32, %c0_i32_0 : i32, i32
  }
  func.func @transform_2(%arg0: i32, %arg1: i32) -> (i32, i32) {
    %c0_i32 = arith.constant 0 : i32
    %c0_i32_0 = arith.constant 0 : i32
    %c0_i32_1 = arith.constant 0 : i32
    return %c0_i32, %c0_i32_0 : i32, i32
  }
  func.func @transform_3(%arg0: i32, %arg1: i32) -> (i32, i32) {
    %c0_i32 = arith.constant 0 : i32
    %c0_i32_0 = arith.constant 0 : i32
    %c0_i32_1 = arith.constant 0 : i32
    return %c0_i32, %c0_i32_0 : i32, i32
  }
  func.func @transform_4(%arg0: i32, %arg1: i32) -> (i32, i32) {
    %c0_i32 = arith.constant 0 : i32
    %c0_i32_0 = arith.constant 0 : i32
    %c0_i32_1 = arith.constant 0 : i32
    return %c0_i32, %c0_i32_0 : i32, i32
  }
  func.func @transform_5(%arg0: i32, %arg1: i32) -> (i32, i32, i32) {
    %c0_i32 = arith.constant 0 : i32
    %c0_i32_0 = arith.constant 0 : i32
    return %arg0, %arg1, %c0_i32 : i32, i32, i32
  }
}

</mosaic_0001>

<llo_original>
// kernel: tpu_custom_call.1
$region0: #{tpu_custom_call.1}
  #allocation0 [shape = 'u32[]', space=smem, size = 0x4, offset = 0x4, fixed_abs, tag = 'smem constant byte address 0x4 - core index']
  #allocation1 [shape = 'u32[144,128]{1,0:T(1,128)}', space=vmem, size = 0x12000, scoped, tag = 'internal scratch']
  %s0 = inlined_call_operand.hbm [shape: bf16[2,256,384], index: 0, kind: input, shape index: {}]
  %s1 = inlined_call_operand.hbm [shape: bf16[384,128], index: 1, kind: input, shape index: {}]
  %s2 = inlined_call_operand.vmem [shape: f32[1,128], index: 2, kind: input, shape index: {}]
  %s3 = inlined_call_operand.hbm [shape: bf16[128,128], index: 3, kind: input, shape index: {}]
  %s4 = inlined_call_operand.vmem [shape: f32[1,128], index: 4, kind: input, shape index: {}]
  %s5 = inlined_call_operand.hbm [shape: f32[2,256,128], index: 5, kind: output, shape index: {}]
  %s6 = sld [smem:[#allocation0]]
  $region65: #{tpu_custom_call.1} parent=0
    _
  %s8 = ssub.s32 1, %s6
  %s9 = scalar_select 0, %s8, %s6
  $region1: #{tpu_custom_call.1} parent=0
    #allocation2 [shape = 'u8[196608]{0}', space=vmem, size = 0x30000, scoped, tag = 'input window, operand 0']
    #allocation3 [shape = 's32[2]{0}', space=sflag, size = 0x8, scoped, tag = 'scoped memory for tpu_custom_call.1']
    #allocation4 [shape = 's32[2]{0}', space=sflag, size = 0x8, scoped, tag = 'scoped memory for tpu_custom_call.1']
    #allocation5 [shape = 'u8[98304]{0}', space=vmem, size = 0x18000, scoped, tag = 'input window, operand 1, single buffered']
    #allocation6 [shape = 's32[1]{0}', space=sflag, size = 0x4, scoped, tag = 'scoped memory for tpu_custom_call.1']
    #allocation7 [shape = 'u8[32768]{0}', space=vmem, size = 0x8000, scoped, tag = 'input window, operand 3, single buffered']
    #allocation8 [shape = 'u8[131072]{0}', space=vmem, size = 0x20000, scoped, tag = 'output window, operand 0']
    %10 = vsyncpa [#allocation3], 0
    %s11 = scalar_lea.sflag [#allocation3], 1
    %12 = vsyncpa %s11, 0
    %13 = vsyncpa [#allocation6], 0
    %14 = vsyncpa [#allocation4], 0
    %s15 = scalar_lea.sflag [#allocation4], 1
    %16 = vsyncpa %s15, 0
    loop: start=0, step=1, limit=6
    $region2: #{tpu_custom_call.1} parent=1 // loop_pre_header
      _
    $region3: #{tpu_custom_call.1} parent=1 // loop_header
      %s18 = sphi 0, %s22
      %p19 = scmp.ge.s32.totalorder %s18, 6
      %s25 = sphi 0, %s37
      %s26 = sphi 0, %s33
      %s27 = sphi 0, %s25
      %s28 = sphi 0, %s26
      %s29 = sphi 0, %s27
      %s30 = sphi 0, %s28
      %s42 = sphi 0, %s44
      %s45 = sphi 0, %s42
      %s46 = sphi 0, %s45
      %s62 = sphi 0, %s46
      %s66 = sphi 0, %s66
      %s68 = sphi 0, %s66
      %s69 = sphi 0, %s68
      %s83 = sphi 0, %s69
      %s87 = sphi 0, %s87
      %s89 = sphi 0, %s87
      %s90 = sphi 0, %s89
      %s104 = sphi 0, %s90
      %s108 = sphi 0, %s108
      %s110 = sphi 0, %s108
      %s111 = sphi 0, %s110
      %s125 = sphi 0, %s111
      %s129 = sphi 0, %s129
      %s131 = sphi 0, %s129
      %s132 = sphi 0, %s131
      %s146 = sphi 0, %s132
      %s154 = sphi 0, %s156
      %s157 = sphi 0, %s154
      %s158 = sphi 0, %s157
      %s174 = sphi 0, %s158
    $region4: #{tpu_custom_call.1} parent=1 // loop_header_branch
      %21 = sbr.rel (%p19) target = $region8
    $region5: #{tpu_custom_call.1} parent=1 // loop_body
      %s23 = ssub.s32 %s18, 1
      %s24 = ssub.s32 %s18, 2
      %s31 = sadd.s32 1, %s26
      %p32 = scmp.ge.s32.totalorder %s31, 2
      %s33 = scalar_select %p32, 0, %s31
      %s34 = sadd.s32 1, %s25
      %s35 = scalar_select %p32, %s34, %s25
      %p36 = scmp.ge.s32.totalorder %s35, 2
      %s37 = scalar_select %p36, 0, %s35
      %s38 = ssub.s32 %s25, %s37
      %s39 = ssub.s32 %s26, %s33
      %s40 = sor.u32 %s38, %s39
      %p41 = scmp.eq.s32.totalorder %s40, 0
      %s43 = sadd.s32 %s42, 1
      %s44 = scalar_select %p41, %s42, %s43
      %p47 = pneg %p41
      %p48 = scmp.eq.s32.totalorder %s18, 3
      %p49 = por %p47, %p48
      %p50 = scmp.ne.s32.totalorder %s42, %s45
      %p51 = scmp.eq.s32.totalorder %s18, 0
      %p52 = por %p50, %p51
      %p53 = scmp.ne.s32.totalorder %s42, %s45
      %p54 = scmp.eq.s32.totalorder %s23, 3
      %p55 = por %p53, %p54
      %p56 = scmp.ne.s32.totalorder %s45, %s46
      %p57 = scmp.eq.s32.totalorder %s23, 0
      %p58 = por %p56, %p57
      %p59 = scmp.ne.s32.totalorder %s45, %s46
      %p60 = scmp.eq.s32.totalorder %s24, 3
      %p61 = por %p59, %p60
      %p63 = scmp.ne.s32.totalorder %s46, %s62
      %p64 = scmp.eq.s32.totalorder %s24, 0
      %p65 = por %p63, %p64
      %s67 = sadd.s32 %s66, 1
      %p70 = scmp.eq.s32.totalorder %s18, 3
      %p71 = scmp.ne.s32.totalorder %s66, %s68
      %p72 = scmp.eq.s32.totalorder %s18, 0
      %p73 = por %p71, %p72
      %p74 = scmp.ne.s32.totalorder %s66, %s68
      %p75 = scmp.eq.s32.totalorder %s23, 3
      %p76 = por %p74, %p75
      %p77 = scmp.ne.s32.totalorder %s68, %s69
      %p78 = scmp.eq.s32.totalorder %s23, 0
      %p79 = por %p77, %p78
      %p80 = scmp.ne.s32.totalorder %s68, %s69
      %p81 = scmp.eq.s32.totalorder %s24, 3
      %p82 = por %p80, %p81
      %p84 = scmp.ne.s32.totalorder %s69, %s83
      %p85 = scmp.eq.s32.totalorder %s24, 0
      %p86 = por %p84, %p85
      %s88 = sadd.s32 %s87, 1
      %p91 = scmp.eq.s32.totalorder %s18, 3
      %p92 = scmp.ne.s32.totalorder %s87, %s89
      %p93 = scmp.eq.s32.totalorder %s18, 0
      %p94 = por %p92, %p93
      %p95 = scmp.ne.s32.totalorder %s87, %s89
      %p96 = scmp.eq.s32.totalorder %s23, 3
      %p97 = por %p95, %p96
      %p98 = scmp.ne.s32.totalorder %s89, %s90
      %p99 = scmp.eq.s32.totalorder %s23, 0
      %p100 = por %p98, %p99
      %p101 = scmp.ne.s32.totalorder %s89, %s90
      %p102 = scmp.eq.s32.totalorder %s24, 3
      %p103 = por %p101, %p102
      %p105 = scmp.ne.s32.totalorder %s90, %s104
      %p106 = scmp.eq.s32.totalorder %s24, 0
      %p107 = por %p105, %p106
      %s109 = sadd.s32 %s108, 1
      %p112 = scmp.eq.s32.totalorder %s18, 3
      %p113 = scmp.ne.s32.totalorder %s108, %s110
      %p114 = scmp.eq.s32.totalorder %s18, 0
      %p115 = por %p113, %p114
      %p116 = scmp.ne.s32.totalorder %s108, %s110
      %p117 = scmp.eq.s32.totalorder %s23, 3
      %p118 = por %p116, %p117
      %p119 = scmp.ne.s32.totalorder %s110, %s111
      %p120 = scmp.eq.s32.totalorder %s23, 0
      %p121 = por %p119, %p120
      %p122 = scmp.ne.s32.totalorder %s110, %s111
      %p123 = scmp.eq.s32.totalorder %s24, 3
      %p124 = por %p122, %p123
      %p126 = scmp.ne.s32.totalorder %s111, %s125
      %p127 = scmp.eq.s32.totalorder %s24, 0
      %p128 = por %p126, %p127
      %s130 = sadd.s32 %s129, 1
      %p133 = scmp.eq.s32.totalorder %s18, 3
      %p134 = scmp.ne.s32.totalorder %s129, %s131
      %p135 = scmp.eq.s32.totalorder %s18, 0
      %p136 = por %p134, %p135
      %p137 = scmp.ne.s32.totalorder %s129, %s131
      %p138 = scmp.eq.s32.totalorder %s23, 3
      %p139 = por %p137, %p138
      %p140 = scmp.ne.s32.totalorder %s131, %s132
      %p141 = scmp.eq.s32.totalorder %s23, 0
      %p142 = por %p140, %p141
      %p143 = scmp.ne.s32.totalorder %s131, %s132
      %p144 = scmp.eq.s32.totalorder %s24, 3
      %p145 = por %p143, %p144
      %p147 = scmp.ne.s32.totalorder %s132, %s146
      %p148 = scmp.eq.s32.totalorder %s24, 0
      %p149 = por %p147, %p148
      %s150 = ssub.s32 %s25, %s37
      %s151 = ssub.s32 %s26, %s33
      %s152 = sor.u32 %s150, %s151
      %p153 = scmp.eq.s32.totalorder %s152, 0
      %s155 = sadd.s32 %s154, 1
      %s156 = scalar_select %p153, %s154, %s155
      %p159 = pneg %p153
      %p160 = scmp.eq.s32.totalorder %s18, 3
      %p161 = por %p159, %p160
      %p162 = scmp.ne.s32.totalorder %s154, %s157
      %p163 = scmp.eq.s32.totalorder %s18, 0
      %p164 = por %p162, %p163
      %p165 = scmp.ne.s32.totalorder %s154, %s157
      %p166 = scmp.eq.s32.totalorder %s23, 3
      %p167 = por %p165, %p166
      %p168 = scmp.ne.s32.totalorder %s157, %s158
      %p169 = scmp.eq.s32.totalorder %s23, 0
      %p170 = por %p168, %p169
      %p171 = scmp.ne.s32.totalorder %s157, %s158
      %p172 = scmp.eq.s32.totalorder %s24, 3
      %p173 = por %p171, %p172
      %p175 = scmp.ne.s32.totalorder %s158, %s174
      %p176 = scmp.eq.s32.totalorder %s24, 0
      %p177 = por %p175, %p176
      %p178 = scmp.le.s32.totalorder 1, %s18
      %p179 = scmp.lt.s32.totalorder %s18, 5
      %p180 = pnand %p178, %p179
      %p181 = pneg %p180
      // Predicated region
      $region9: #{tpu_custom_call.1} parent=5 // pred_check
        _
      $region10: #{tpu_custom_call.1} parent=5 // pred_check_branch
        %183 = sbr.rel (%p180) target = $region12
      $region11: #{tpu_custom_call.1} parent=5 // pred_region
        %s184 = ssub.s32 %s18, 1
        // Predicated region
        $region13: #{tpu_custom_call.1} parent=11 // pred_check
          %p185 = pneg %p79
        $region14: #{tpu_custom_call.1} parent=11 // pred_check_branch
          %187 = sbr.rel (%p185) target = $region16
        $region15: #{tpu_custom_call.1} parent=11 // pred_region
          %s189 = ssub.s32 3072, 3072
          %190 = vsyncadd [#allocation6], %s189
          %s191 = sshll.u32 [#allocation5], 4
          %s192 = int_to_ptr.vmem [resolvable:$true] %s191
          %197 = dma.hbm_to_vmem [thread:$0]  %s1, 3072, %s192, [#allocation6], 64, 64, 4
        $region16: #{tpu_custom_call.1} parent=11 // pred_fallthru
          _
        // Predicated region
        $region17: #{tpu_custom_call.1} parent=11 // pred_check
          %p198 = pneg %p100
        $region18: #{tpu_custom_call.1} parent=11 // pred_check_branch
          %200 = sbr.rel (%p198) target = $region20
        $region19: #{tpu_custom_call.1} parent=11 // pred_region
          _
        $region20: #{tpu_custom_call.1} parent=11 // pred_fallthru
          _
        // Predicated region
        $region21: #{tpu_custom_call.1} parent=11 // pred_check
          %p201 = pneg %p121
        $region22: #{tpu_custom_call.1} parent=11 // pred_check_branch
          %203 = sbr.rel (%p201) target = $region24
        $region23: #{tpu_custom_call.1} parent=11 // pred_region
          %s205 = ssub.s32 1024, 1024
          %206 = vsyncadd [#allocation6], %s205
          %s207 = sshll.u32 [#allocation7], 4
          %s208 = int_to_ptr.vmem [resolvable:$true] %s207
          %213 = dma.hbm_to_vmem [thread:$0]  %s3, 1024, %s208, [#allocation6], 64, 64, 4
        $region24: #{tpu_custom_call.1} parent=11 // pred_fallthru
          _
        // Predicated region
        $region25: #{tpu_custom_call.1} parent=11 // pred_check
          %p214 = pneg %p142
        $region26: #{tpu_custom_call.1} parent=11 // pred_check_branch
          %216 = sbr.rel (%p214) target = $region28
        $region27: #{tpu_custom_call.1} parent=11 // pred_region
          _
        $region28: #{tpu_custom_call.1} parent=11 // pred_fallthru
          _
      $region12: #{tpu_custom_call.1} parent=5 // pred_fallthru
        _
      %p217 = scmp.lt.s32.totalorder %s18, 4
      // Predicated region
      $region29: #{tpu_custom_call.1} parent=5 // pred_check
        %p218 = pneg %p217
      $region30: #{tpu_custom_call.1} parent=5 // pred_check_branch
        %220 = sbr.rel (%p218) target = $region32
      $region31: #{tpu_custom_call.1} parent=5 // pred_region
        // Predicated region
        $region33: #{tpu_custom_call.1} parent=31 // pred_check
          %p221 = pneg %p52
        $region34: #{tpu_custom_call.1} parent=31 // pred_check_branch
          %223 = sbr.rel (%p221) target = $region36
        $region35: #{tpu_custom_call.1} parent=31 // pred_region
          %s224 = sand.u32 %s42, 1
          %s225 = scalar_lea.sflag [#allocation3], %s224
          %s226 = sand.u32 %s42, 1
          %s227 = smul.addr %s226, 192
          %s228 = scalar_lea.vmem [#allocation2], %s227
          %s229 = smul.u32 16, %s26
          %s231 = ssub.s32 3072, 3072
          %232 = vsyncadd %s225, %s231
          %s233 = smul.addr %s229, 3
          %s234 = smul.addr %s25, 96
          %s235 = sadd.s32 %s233, %s234
          %s236 = smul.addr %s235, 64
          %s237 = scalar_lea.hbm %s0, %s236
          %s238 = sshll.u32 %s228, 4
          %s239 = int_to_ptr.vmem [resolvable:$true] %s238
          %244 = dma.hbm_to_vmem [thread:$0]  %s237, 3072, %s239, %s225, 192, 192, 12
        $region36: #{tpu_custom_call.1} parent=31 // pred_fallthru
          _
      $region32: #{tpu_custom_call.1} parent=5 // pred_fallthru
        _
      %p245 = scmp.le.s32.totalorder 1, %s18
      %p246 = scmp.lt.s32.totalorder %s18, 5
      %p247 = pnand %p245, %p246
      %p248 = pneg %p247
      // Predicated region
      $region37: #{tpu_custom_call.1} parent=5 // pred_check
        _
      $region38: #{tpu_custom_call.1} parent=5 // pred_check_branch
        %250 = sbr.rel (%p247) target = $region40
      $region39: #{tpu_custom_call.1} parent=5 // pred_region
        %s251 = ssub.s32 %s18, 1
        %s252 = sand.u32 %s45, 1
        %s253 = scalar_lea.sflag [#allocation3], %s252
        %s254 = sand.u32 %s45, 1
        %s255 = smul.addr %s254, 192
        %s256 = scalar_lea.vmem [#allocation2], %s255
        // Predicated region
        $region41: #{tpu_custom_call.1} parent=39 // pred_check
          %p257 = pneg %p58
        $region42: #{tpu_custom_call.1} parent=39 // pred_check_branch
          %259 = sbr.rel (%p257) target = $region44
        $region43: #{tpu_custom_call.1} parent=39 // pred_region
          %260 = dma.done %s253, 3072
        $region44: #{tpu_custom_call.1} parent=39 // pred_fallthru
          _
        // Predicated region
        $region45: #{tpu_custom_call.1} parent=39 // pred_check
          %p261 = pneg %p79
        $region46: #{tpu_custom_call.1} parent=39 // pred_check_branch
          %263 = sbr.rel (%p261) target = $region48
        $region47: #{tpu_custom_call.1} parent=39 // pred_region
          %264 = dma.done [#allocation6], 3072
        $region48: #{tpu_custom_call.1} parent=39 // pred_fallthru
          _
        // Predicated region
        $region49: #{tpu_custom_call.1} parent=39 // pred_check
          %p265 = pneg %p121
        $region50: #{tpu_custom_call.1} parent=39 // pred_check_branch
          %267 = sbr.rel (%p265) target = $region52
        $region51: #{tpu_custom_call.1} parent=39 // pred_region
          %268 = dma.done [#allocation6], 1024
        $region52: #{tpu_custom_call.1} parent=39 // pred_fallthru
          _
        %s269 = sand.u32 %s45, 1
        %s270 = scalar_lea.sflag [#allocation3], %s269
        %s271 = sand.u32 %s45, 1
        %s272 = smul.addr %s271, 192
        %s273 = scalar_lea.vmem [#allocation2], %s272
        %p274 = pneg %p58
        %p275 = pneg %p55
        %p276 = pneg %p79
        %p277 = pneg %p76
        %p278 = pneg %p100
        %p279 = pneg %p97
        %p280 = pneg %p121
        %p281 = pneg %p118
        %p282 = pneg %p142
        %p283 = pneg %p139
        %p284 = pneg %p170
        %p285 = pneg %p167
        %s286 = sand.u32 %s157, 1
        %s287 = scalar_lea.sflag [#allocation4], %s286
        %s288 = sand.u32 %s157, 1
        %s289 = smul.addr %s288, 128
        %s290 = scalar_lea.vmem [#allocation8], %s289
        %s291 = smul.u32 16, %s28
        %s292 = smul.u32 16, %s28
        %v294 = vld [vmem:[%s256] sm:$0xff]
        %v295 = vld [vmem:[%s256 + $0x8] sm:$0xf]
        %v296 = vld [vmem:[%s256 + $0xc] sm:$0xff]
        %v297 = vld [vmem:[%s256 + $0x14] sm:$0xf]
        %v298 = vld [vmem:[%s256 + $0x18] sm:$0xff]
        %v299 = vld [vmem:[%s256 + $0x20] sm:$0xf]
        %v300 = vld [vmem:[%s256 + $0x24] sm:$0xff]
        %v301 = vld [vmem:[%s256 + $0x2c] sm:$0xf]
        %v302 = vld [vmem:[%s256 + $0x30] sm:$0xff]
        %v303 = vld [vmem:[%s256 + $0x38] sm:$0xf]
        %v304 = vld [vmem:[%s256 + $0x3c] sm:$0xff]
        %v305 = vld [vmem:[%s256 + $0x44] sm:$0xf]
        %v306 = vld [vmem:[%s256 + $0x48] sm:$0xff]
        %v307 = vld [vmem:[%s256 + $0x50] sm:$0xf]
        %v308 = vld [vmem:[%s256 + $0x54] sm:$0xff]
        %v309 = vld [vmem:[%s256 + $0x5c] sm:$0xf]
        %v310 = vld [vmem:[%s256 + $0x60] sm:$0xff]
        %v311 = vld [vmem:[%s256 + $0x68] sm:$0xf]
        %v312 = vld [vmem:[%s256 + $0x6c] sm:$0xff]
        %v313 = vld [vmem:[%s256 + $0x74] sm:$0xf]
        %v314 = vld [vmem:[%s256 + $0x78] sm:$0xff]
        %v315 = vld [vmem:[%s256 + $0x80] sm:$0xf]
        %v316 = vld [vmem:[%s256 + $0x84] sm:$0xff]
        %v317 = vld [vmem:[%s256 + $0x8c] sm:$0xf]
        %v318 = vld [vmem:[%s256 + $0x90] sm:$0xff]
        %v319 = vld [vmem:[%s256 + $0x98] sm:$0xf]
        %v320 = vld [vmem:[%s256 + $0x9c] sm:$0xff]
        %v321 = vld [vmem:[%s256 + $0xa4] sm:$0xf]
        %v322 = vld [vmem:[%s256 + $0xa8] sm:$0xff]
        %v323 = vld [vmem:[%s256 + $0xb0] sm:$0xf]
        %v324 = vld [vmem:[%s256 + $0xb4] sm:$0xff]
        %v325 = vld [vmem:[%s256 + $0xbc] sm:$0xf]
        %v326 = vld [vmem:[#allocation5] sm:$0xf]
        %v327 = vld [vmem:[#allocation5 + $0x4] sm:$0xf]
        %v328 = vld [vmem:[#allocation5 + $0x8] sm:$0xf]
        %v329 = vld [vmem:[#allocation5 + $0xc] sm:$0xf]
        %v330 = vld [vmem:[#allocation5 + $0x10] sm:$0xf]
        %v331 = vld [vmem:[#allocation5 + $0x14] sm:$0xf]
        %v332 = vld [vmem:[#allocation5 + $0x18] sm:$0xf]
        %v333 = vld [vmem:[#allocation5 + $0x1c] sm:$0xf]
        %v334 = vld [vmem:[#allocation5 + $0x20] sm:$0xf]
        %v335 = vld [vmem:[#allocation5 + $0x24] sm:$0xf]
        %v336 = vld [vmem:[#allocation5 + $0x28] sm:$0xf]
        %v337 = vld [vmem:[#allocation5 + $0x2c] sm:$0xf]
        %v338 = vld [vmem:[#allocation5 + $0x30] sm:$0xf]
        %v339 = vld [vmem:[#allocation5 + $0x34] sm:$0xf]
        %v340 = vld [vmem:[#allocation5 + $0x38] sm:$0xf]
        %v341 = vld [vmem:[#allocation5 + $0x3c] sm:$0xf]
        %v342 = vld [vmem:[#allocation5 + $0x40] sm:$0xf]
        %v343 = vld [vmem:[#allocation5 + $0x44] sm:$0xf]
        %v344 = vld [vmem:[#allocation5 + $0x48] sm:$0xf]
        %v345 = vld [vmem:[#allocation5 + $0x4c] sm:$0xf]
        %v346 = vld [vmem:[#allocation5 + $0x50] sm:$0xf]
        %v347 = vld [vmem:[#allocation5 + $0x54] sm:$0xf]
        %v348 = vld [vmem:[#allocation5 + $0x58] sm:$0xf]
        %v349 = vld [vmem:[#allocation5 + $0x5c] sm:$0xf]
        %v350 = vld [vmem:[#allocation5 + $0x60] sm:$0xf]
        %v351 = vld [vmem:[#allocation5 + $0x64] sm:$0xf]
        %v352 = vld [vmem:[#allocation5 + $0x68] sm:$0xf]
        %v353 = vld [vmem:[#allocation5 + $0x6c] sm:$0xf]
        %v354 = vld [vmem:[#allocation5 + $0x70] sm:$0xf]
        %v355 = vld [vmem:[#allocation5 + $0x74] sm:$0xf]
        %v356 = vld [vmem:[#allocation5 + $0x78] sm:$0xf]
        %v357 = vld [vmem:[#allocation5 + $0x7c] sm:$0xf]
        %v358 = vld [vmem:[#allocation5 + $0x80] sm:$0xf]
        %v359 = vld [vmem:[#allocation5 + $0x84] sm:$0xf]
        %v360 = vld [vmem:[#allocation5 + $0x88] sm:$0xf]
        %v361 = vld [vmem:[#allocation5 + $0x8c] sm:$0xf]
        %v362 = vld [vmem:[#allocation5 + $0x90] sm:$0xf]
        %v363 = vld [vmem:[#allocation5 + $0x94] sm:$0xf]
        %v364 = vld [vmem:[#allocation5 + $0x98] sm:$0xf]
        %v365 = vld [vmem:[#allocation5 + $0x9c] sm:$0xf]
        %v366 = vld [vmem:[#allocation5 + $0xa0] sm:$0xf]
        %v367 = vld [vmem:[#allocation5 + $0xa4] sm:$0xf]
        %v368 = vld [vmem:[#allocation5 + $0xa8] sm:$0xf]
        %v369 = vld [vmem:[#allocation5 + $0xac] sm:$0xf]
        %v370 = vld [vmem:[#allocation5 + $0xb0] sm:$0xf]
        %v371 = vld [vmem:[#allocation5 + $0xb4] sm:$0xf]
        %v372 = vld [vmem:[#allocation5 + $0xb8] sm:$0xf]
        %v373 = vld [vmem:[#allocation5 + $0xbc] sm:$0xf]
        %v374 = vld [vmem:[%s2] sm:$0x1]
        %v376 = vlaneseq
        %v377 = vshrl.u32 %v376, 7
        %v378 = vsub.s32 0, %v377
        %v379 = vrot.slane %v374, %v378
        %v413 = vunpack.c.l.b16 %v294
        %v414 = vunpack.c.h.b16 %v294
        %v415 = vunpack.c.l.b16 %v295
        %v416 = vunpack.c.l.b16 %v296
        %v417 = vunpack.c.h.b16 %v296
        %v418 = vunpack.c.l.b16 %v297
        %v419 = vunpack.c.l.b16 %v298
        %v420 = vunpack.c.h.b16 %v298
        %v421 = vunpack.c.l.b16 %v299
        %v422 = vunpack.c.l.b16 %v300
        %v423 = vunpack.c.h.b16 %v300
        %v424 = vunpack.c.l.b16 %v301
        %v425 = vunpack.c.l.b16 %v302
        %v426 = vunpack.c.h.b16 %v302
        %v427 = vunpack.c.l.b16 %v303
        %v428 = vunpack.c.l.b16 %v304
        %v429 = vunpack.c.h.b16 %v304
        %v430 = vunpack.c.l.b16 %v305
        %v431 = vunpack.c.l.b16 %v306
        %v432 = vunpack.c.h.b16 %v306
        %v433 = vunpack.c.l.b16 %v307
        %v434 = vunpack.c.l.b16 %v308
        %v435 = vunpack.c.h.b16 %v308
        %v436 = vunpack.c.l.b16 %v309
        %v437 = vunpack.c.l.b16 %v310
        %v438 = vunpack.c.h.b16 %v310
        %v439 = vunpack.c.l.b16 %v311
        %v440 = vunpack.c.l.b16 %v312
        %v441 = vunpack.c.h.b16 %v312
        %v442 = vunpack.c.l.b16 %v313
        %v443 = vunpack.c.l.b16 %v314
        %v444 = vunpack.c.h.b16 %v314
        %v445 = vunpack.c.l.b16 %v315
        %v446 = vunpack.c.l.b16 %v316
        %v447 = vunpack.c.h.b16 %v316
        %v448 = vunpack.c.l.b16 %v317
        %v449 = vunpack.c.l.b16 %v318
        %v450 = vunpack.c.h.b16 %v318
        %v451 = vunpack.c.l.b16 %v319
        %v452 = vunpack.c.l.b16 %v320
        %v453 = vunpack.c.h.b16 %v320
        %v454 = vunpack.c.l.b16 %v321
        %v455 = vunpack.c.l.b16 %v322
        %v456 = vunpack.c.h.b16 %v322
        %v457 = vunpack.c.l.b16 %v323
        %v458 = vunpack.c.l.b16 %v324
        %v459 = vunpack.c.h.b16 %v324
        %v460 = vunpack.c.l.b16 %v325
        %v461 = vpack.c.b16 %v416, %v413
        %v462 = vpack.c.b16 %v417, %v414
        %v463 = vpack.c.b16 %v418, %v415
        %v464 = vpack.c.b16 %v422, %v419
        %v465 = vpack.c.b16 %v423, %v420
        %v466 = vpack.c.b16 %v424, %v421
        %v467 = vpack.c.b16 %v428, %v425
        %v468 = vpack.c.b16 %v429, %v426
        %v469 = vpack.c.b16 %v430, %v427
        %v470 = vpack.c.b16 %v434, %v431
        %v471 = vpack.c.b16 %v435, %v432
        %v472 = vpack.c.b16 %v436, %v433
        %v473 = vpack.c.b16 %v440, %v437
        %v474 = vpack.c.b16 %v441, %v438
        %v475 = vpack.c.b16 %v442, %v439
        %v476 = vpack.c.b16 %v446, %v443
        %v477 = vpack.c.b16 %v447, %v444
        %v478 = vpack.c.b16 %v448, %v445
        %v479 = vpack.c.b16 %v452, %v449
        %v480 = vpack.c.b16 %v453, %v450
        %v481 = vpack.c.b16 %v454, %v451
        %v482 = vpack.c.b16 %v458, %v455
        %v483 = vpack.c.b16 %v459, %v456
        %v484 = vpack.c.b16 %v460, %v457
        %v557 = vunpack.c.l.b16 %v326
        %v558 = vunpack.c.l.b16 %v327
        %v559 = vunpack.c.l.b16 %v328
        %v560 = vunpack.c.l.b16 %v329
        %v561 = vunpack.c.l.b16 %v330
        %v562 = vunpack.c.l.b16 %v331
        %v563 = vunpack.c.l.b16 %v332
        %v564 = vunpack.c.l.b16 %v333
        %v565 = vunpack.c.l.b16 %v334
        %v566 = vunpack.c.l.b16 %v335
        %v567 = vunpack.c.l.b16 %v336
        %v568 = vunpack.c.l.b16 %v337
        %v569 = vunpack.c.l.b16 %v338
        %v570 = vunpack.c.l.b16 %v339
        %v571 = vunpack.c.l.b16 %v340
        %v572 = vunpack.c.l.b16 %v341
        %v573 = vunpack.c.l.b16 %v342
        %v574 = vunpack.c.l.b16 %v343
        %v575 = vunpack.c.l.b16 %v344
        %v576 = vunpack.c.l.b16 %v345
        %v577 = vunpack.c.l.b16 %v346
        %v578 = vunpack.c.l.b16 %v347
        %v579 = vunpack.c.l.b16 %v348
        %v580 = vunpack.c.l.b16 %v349
        %v581 = vunpack.c.l.b16 %v350
        %v582 = vunpack.c.l.b16 %v351
        %v583 = vunpack.c.l.b16 %v352
        %v584 = vunpack.c.l.b16 %v353
        %v585 = vunpack.c.l.b16 %v354
        %v586 = vunpack.c.l.b16 %v355
        %v587 = vunpack.c.l.b16 %v356
        %v588 = vunpack.c.l.b16 %v357
        %v589 = vunpack.c.l.b16 %v358
        %v590 = vunpack.c.l.b16 %v359
        %v591 = vunpack.c.l.b16 %v360
        %v592 = vunpack.c.l.b16 %v361
        %v593 = vunpack.c.l.b16 %v362
        %v594 = vunpack.c.l.b16 %v363
        %v595 = vunpack.c.l.b16 %v364
        %v596 = vunpack.c.l.b16 %v365
        %v597 = vunpack.c.l.b16 %v366
        %v598 = vunpack.c.l.b16 %v367
        %v599 = vunpack.c.l.b16 %v368
        %v600 = vunpack.c.l.b16 %v369
        %v601 = vunpack.c.l.b16 %v370
        %v602 = vunpack.c.l.b16 %v371
        %v603 = vunpack.c.l.b16 %v372
        %v604 = vunpack.c.l.b16 %v373
        %v605 = vpack.c.b16 %v558, %v557
        %v606 = vpack.c.b16 %v560, %v559
        %v607 = vpack.c.b16 %v562, %v561
        %v608 = vpack.c.b16 %v564, %v563
        %v609 = vpack.c.b16 %v566, %v565
        %v610 = vpack.c.b16 %v568, %v567
        %v611 = vpack.c.b16 %v570, %v569
        %v612 = vpack.c.b16 %v572, %v571
        %v613 = vpack.c.b16 %v574, %v573
        %v614 = vpack.c.b16 %v576, %v575
        %v615 = vpack.c.b16 %v578, %v577
        %v616 = vpack.c.b16 %v580, %v579
        %v617 = vpack.c.b16 %v582, %v581
        %v618 = vpack.c.b16 %v584, %v583
        %v619 = vpack.c.b16 %v586, %v585
        %v620 = vpack.c.b16 %v588, %v587
        %v621 = vpack.c.b16 %v590, %v589
        %v622 = vpack.c.b16 %v592, %v591
        %v623 = vpack.c.b16 %v594, %v593
        %v624 = vpack.c.b16 %v596, %v595
        %v625 = vpack.c.b16 %v598, %v597
        %v626 = vpack.c.b16 %v600, %v599
        %v627 = vpack.c.b16 %v602, %v601
        %v628 = vpack.c.b16 %v604, %v603
        %653 = vmatprep.subr.bf16.mxu0 0
        %654 = vmatpush1.bf16.msra.mxu0 %v605
        %655 = vmatprep.subr.bf16.mxu0 0
        %656 = vmatpush1.bf16.msra.mxu0 %v606
        %657 = vmatprep.subr.bf16.mxu0 0
        %658 = vmatpush1.bf16.msra.mxu0 %v607
        %659 = vmatprep.subr.bf16.mxu0 0
        %660 = vmatpush1.bf16.msra.mxu0 %v608
        %661 = vmatprep.subr.bf16.mxu0 0
        %662 = vmatpush1.bf16.msra.mxu0 %v609
        %663 = vmatprep.subr.bf16.mxu0 0
        %664 = vmatpush1.bf16.msra.mxu0 %v610
        %665 = vmatprep.subr.bf16.mxu0 0
        %666 = vmatpush1.bf16.msra.mxu0 %v611
        %667 = vmatprep.subr.bf16.mxu0 0
        %668 = vmatpush1.bf16.msra.mxu0 %v612
        %669 = vmatprep.subr.bf16.mxu0 0
        %670 = vmatpush1.bf16.msra.mxu0 %v613
        %671 = vmatprep.subr.bf16.mxu0 0
        %672 = vmatpush1.bf16.msra.mxu0 %v614
        %673 = vmatprep.subr.bf16.mxu0 0
        %674 = vmatpush1.bf16.msra.mxu0 %v615
        %675 = vmatprep.subr.bf16.mxu0 0
        %676 = vmatpush1.bf16.msra.mxu0 %v616
        %677 = vmatprep.subr.bf16.mxu0 0
        %678 = vmatpush1.bf16.msra.mxu0 %v617
        %679 = vmatprep.subr.bf16.mxu0 0
        %680 = vmatpush1.bf16.msra.mxu0 %v618
        %681 = vmatprep.subr.bf16.mxu0 0
        %682 = vmatpush1.bf16.msra.mxu0 %v619
        %683 = vmatprep.subr.bf16.mxu0 0
        %684 = vmatpush1.bf16.msra.mxu0 %v620
        %685 = vmatprep.mubr.bf16.mxu0 %v462
        %686 = vmatmul.mubr.bf16.gmra.mrb[0].mxu0 %v461
        %v687 = vpop.f32.mrb[0].mxu0
        %v688 = vadd.f32 %v379, %v687
        %v689 = vpop.f32.mrb[0].mxu0
        %v690 = vpop.f32.mrb[0].mxu0
        %v691 = vadd.f32 %v379, %v690
        %v692 = vpop.f32.mrb[0].mxu0
        %693 = vmatprep.mubr.bf16.mxu0 %v465
        %694 = vmatmul.mubr.bf16.gmra.mrb[0].mxu0 %v464
        %v695 = vpop.f32.mrb[0].mxu0
        %v696 = vadd.f32 %v379, %v695
        %v697 = vpop.f32.mrb[0].mxu0
        %v698 = vpop.f32.mrb[0].mxu0
        %v699 = vadd.f32 %v379, %v698
        %v700 = vpop.f32.mrb[0].mxu0
        %701 = vmatprep.mubr.bf16.mxu0 %v468
        %702 = vmatmul.mubr.bf16.gmra.mrb[0].mxu0 %v467
        %v703 = vpop.f32.mrb[0].mxu0
        %v704 = vadd.f32 %v379, %v703
        %v705 = vpop.f32.mrb[0].mxu0
        %v706 = vpop.f32.mrb[0].mxu0
        %v707 = vadd.f32 %v379, %v706
        %v708 = vpop.f32.mrb[0].mxu0
        %709 = vmatprep.mubr.bf16.mxu0 %v471
        %710 = vmatmul.mubr.bf16.gmra.mrb[0].mxu0 %v470
        %v711 = vpop.f32.mrb[0].mxu0
        %v712 = vadd.f32 %v379, %v711
        %v713 = vpop.f32.mrb[0].mxu0
        %v714 = vpop.f32.mrb[0].mxu0
        %v715 = vadd.f32 %v379, %v714
        %v716 = vpop.f32.mrb[0].mxu0
        %717 = vmatprep.mubr.bf16.mxu0 %v474
        %718 = vmatmul.mubr.bf16.gmra.mrb[0].mxu0 %v473
        %v719 = vpop.f32.mrb[0].mxu0
        %v720 = vadd.f32 %v379, %v719
        %v721 = vpop.f32.mrb[0].mxu0
        %v722 = vpop.f32.mrb[0].mxu0
        %v723 = vadd.f32 %v379, %v722
        %v724 = vpop.f32.mrb[0].mxu0
        %725 = vmatprep.mubr.bf16.mxu0 %v477
        %726 = vmatmul.mubr.bf16.gmra.mrb[0].mxu0 %v476
        %v727 = vpop.f32.mrb[0].mxu0
        %v728 = vadd.f32 %v379, %v727
        %v729 = vpop.f32.mrb[0].mxu0
        %v730 = vpop.f32.mrb[0].mxu0
        %v731 = vadd.f32 %v379, %v730
        %v732 = vpop.f32.mrb[0].mxu0
        %733 = vmatprep.mubr.bf16.mxu0 %v480
        %734 = vmatmul.mubr.bf16.gmra.mrb[0].mxu0 %v479
        %v735 = vpop.f32.mrb[0].mxu0
        %v736 = vadd.f32 %v379, %v735
        %v737 = vpop.f32.mrb[0].mxu0
        %v738 = vpop.f32.mrb[0].mxu0
        %v739 = vadd.f32 %v379, %v738
        %v740 = vpop.f32.mrb[0].mxu0
        %741 = vmatprep.mubr.bf16.mxu0 %v483
        %742 = vmatmul.mubr.bf16.gmra.mrb[0].mxu0 %v482
        %v743 = vpop.f32.mrb[0].mxu0
        %v744 = vadd.f32 %v379, %v743
        %v745 = vpop.f32.mrb[0].mxu0
        %v746 = vpop.f32.mrb[0].mxu0
        %v747 = vadd.f32 %v379, %v746
        %v748 = vpop.f32.mrb[0].mxu0
        %749 = vdwg.mxu0
        %750 = vmatprep.subr.bf16.mxu0 0
        %751 = vmatpush1.bf16.msra.mxu0 %v621
        %752 = vmatprep.subr.bf16.mxu0 0
        %753 = vmatpush1.bf16.msra.mxu0 %v622
        %754 = vmatprep.subr.bf16.mxu0 0
        %755 = vmatpush1.bf16.msra.mxu0 %v623
        %756 = vmatprep.subr.bf16.mxu0 0
        %757 = vmatpush1.bf16.msra.mxu0 %v624
        %758 = vmatprep.subr.bf16.mxu0 0
        %759 = vmatpush1.bf16.msra.mxu0 %v625
        %760 = vmatprep.subr.bf16.mxu0 0
        %761 = vmatpush1.bf16.msra.mxu0 %v626
        %762 = vmatprep.subr.bf16.mxu0 0
        %763 = vmatpush1.bf16.msra.mxu0 %v627
        %764 = vmatprep.subr.bf16.mxu0 0
        %765 = vmatpush1.bf16.msra.mxu0 %v628
        %766 = vmatprep.subr.bf16.mxu0 0
        %767 = vmatpush1.bf16.msra.mxu0 0
        %768 = vmatprep.subr.bf16.mxu0 0
        %769 = vmatpush1.bf16.msra.mxu0 0
        %770 = vmatprep.subr.bf16.mxu0 0
        %771 = vmatpush1.bf16.msra.mxu0 0
        %772 = vmatprep.subr.bf16.mxu0 0
        %773 = vmatpush1.bf16.msra.mxu0 0
        %774 = vmatprep.subr.bf16.mxu0 0
        %775 = vmatpush1.bf16.msra.mxu0 0
        %776 = vmatprep.subr.bf16.mxu0 0
        %777 = vmatpush1.bf16.msra.mxu0 0
        %778 = vmatprep.subr.bf16.mxu0 0
        %779 = vmatpush1.bf16.msra.mxu0 0
        %780 = vmatprep.subr.bf16.mxu0 0
        %781 = vmatpush1.bf16.msra.mxu0 0
        %782 = vmatprep.mubr.bf16.mxu0 0
        %783 = vmatmul.mubr.bf16.gmra.mrb[0].mxu0 %v463
        %v784 = vpop.f32.mrb[0].mxu0
        %v785 = vadd.f32 %v688, %v784
        %v786 = vpop.f32.mrb[0].mxu0
        %v787 = vpop.f32.mrb[0].mxu0
        %v788 = vadd.f32 %v691, %v787
        %v789 = vpop.f32.mrb[0].mxu0
        %790 = vmatprep.mubr.bf16.mxu0 0
        %791 = vmatmul.mubr.bf16.gmra.mrb[0].mxu0 %v466
        %v792 = vpop.f32.mrb[0].mxu0
        %v793 = vadd.f32 %v696, %v792
        %v794 = vpop.f32.mrb[0].mxu0
        %v795 = vpop.f32.mrb[0].mxu0
        %v796 = vadd.f32 %v699, %v795
        %v797 = vpop.f32.mrb[0].mxu0
        %798 = vmatprep.mubr.bf16.mxu0 0
        %799 = vmatmul.mubr.bf16.gmra.mrb[0].mxu0 %v469
        %v800 = vpop.f32.mrb[0].mxu0
        %v801 = vadd.f32 %v704, %v800
        %v802 = vpop.f32.mrb[0].mxu0
        %v803 = vpop.f32.mrb[0].mxu0
        %v804 = vadd.f32 %v707, %v803
        %v805 = vpop.f32.mrb[0].mxu0
        %806 = vmatprep.mubr.bf16.mxu0 0
        %807 = vmatmul.mubr.bf16.gmra.mrb[0].mxu0 %v472
        %v808 = vpop.f32.mrb[0].mxu0
        %v809 = vadd.f32 %v712, %v808
        %v810 = vpop.f32.mrb[0].mxu0
        %v811 = vpop.f32.mrb[0].mxu0
        %v812 = vadd.f32 %v715, %v811
        %v813 = vpop.f32.mrb[0].mxu0
        %814 = vmatprep.mubr.bf16.mxu0 0
        %815 = vmatmul.mubr.bf16.gmra.mrb[0].mxu0 %v475
        %v816 = vpop.f32.mrb[0].mxu0
        %v817 = vadd.f32 %v720, %v816
        %v818 = vpop.f32.mrb[0].mxu0
        %v819 = vpop.f32.mrb[0].mxu0
        %v820 = vadd.f32 %v723, %v819
        %v821 = vpop.f32.mrb[0].mxu0
        %822 = vmatprep.mubr.bf16.mxu0 0
        %823 = vmatmul.mubr.bf16.gmra.mrb[0].mxu0 %v478
        %v824 = vpop.f32.mrb[0].mxu0
        %v825 = vadd.f32 %v728, %v824
        %v826 = vpop.f32.mrb[0].mxu0
        %v827 = vpop.f32.mrb[0].mxu0
        %v828 = vadd.f32 %v731, %v827
        %v829 = vpop.f32.mrb[0].mxu0
        %830 = vmatprep.mubr.bf16.mxu0 0
        %831 = vmatmul.mubr.bf16.gmra.mrb[0].mxu0 %v481
        %v832 = vpop.f32.mrb[0].mxu0
        %v833 = vadd.f32 %v736, %v832
        %v834 = vpop.f32.mrb[0].mxu0
        %v835 = vpop.f32.mrb[0].mxu0
        %v836 = vadd.f32 %v739, %v835
        %v837 = vpop.f32.mrb[0].mxu0
        %838 = vmatprep.mubr.bf16.mxu0 0
        %839 = vmatmul.mubr.bf16.gmra.mrb[0].mxu0 %v484
        %v840 = vpop.f32.mrb[0].mxu0
        %v841 = vadd.f32 %v744, %v840
        %v842 = vpop.f32.mrb[0].mxu0
        %v843 = vpop.f32.mrb[0].mxu0
        %v844 = vadd.f32 %v747, %v843
        %v845 = vpop.f32.mrb[0].mxu0
        %846 = vdwg.mxu0
        %v847 = vmax.f32 %v785, 0.0
        %v848 = vmax.f32 %v788, 0.0
        %v849 = vmax.f32 %v793, 0.0
        %v850 = vmax.f32 %v796, 0.0
        %v851 = vmax.f32 %v801, 0.0
        %v852 = vmax.f32 %v804, 0.0
        %v853 = vmax.f32 %v809, 0.0
        %v854 = vmax.f32 %v812, 0.0
        %v855 = vmax.f32 %v817, 0.0
        %v856 = vmax.f32 %v820, 0.0
        %v857 = vmax.f32 %v825, 0.0
        %v858 = vmax.f32 %v828, 0.0
        %v859 = vmax.f32 %v833, 0.0
        %v860 = vmax.f32 %v836, 0.0
        %v861 = vmax.f32 %v841, 0.0
        %v862 = vmax.f32 %v844, 0.0
        %v863 = vpack.c.bf16 %v848, %v847
        %v864 = vpack.c.bf16 %v850, %v849
        %v865 = vpack.c.bf16 %v852, %v851
        %v866 = vpack.c.bf16 %v854, %v853
        %v867 = vpack.c.bf16 %v856, %v855
        %v868 = vpack.c.bf16 %v858, %v857
        %v869 = vpack.c.bf16 %v860, %v859
        %v870 = vpack.c.bf16 %v862, %v861
        %v871 = vld [vmem:[#allocation7] sm:$0xf]
        %v872 = vld [vmem:[#allocation7 + $0x4] sm:$0xf]
        %v873 = vld [vmem:[#allocation7 + $0x8] sm:$0xf]
        %v874 = vld [vmem:[#allocation7 + $0xc] sm:$0xf]
        %v875 = vld [vmem:[#allocation7 + $0x10] sm:$0xf]
        %v876 = vld [vmem:[#allocation7 + $0x14] sm:$0xf]
        %v877 = vld [vmem:[#allocation7 + $0x18] sm:$0xf]
        %v878 = vld [vmem:[#allocation7 + $0x1c] sm:$0xf]
        %v879 = vld [vmem:[#allocation7 + $0x20] sm:$0xf]
        %v880 = vld [vmem:[#allocation7 + $0x24] sm:$0xf]
        %v881 = vld [vmem:[#allocation7 + $0x28] sm:$0xf]
        %v882 = vld [vmem:[#allocation7 + $0x2c] sm:$0xf]
        %v883 = vld [vmem:[#allocation7 + $0x30] sm:$0xf]
        %v884 = vld [vmem:[#allocation7 + $0x34] sm:$0xf]
        %v885 = vld [vmem:[#allocation7 + $0x38] sm:$0xf]
        %v886 = vld [vmem:[#allocation7 + $0x3c] sm:$0xf]
        %v887 = vld [vmem:[%s4] sm:$0x1]
        %v889 = vlaneseq
        %v890 = vshrl.u32 %v889, 7
        %v891 = vsub.s32 0, %v890
        %v892 = vrot.slane %v887, %v891
        %v910 = vunpack.c.l.b16 %v871
        %v911 = vunpack.c.l.b16 %v872
        %v912 = vunpack.c.l.b16 %v873
        %v913 = vunpack.c.l.b16 %v874
        %v914 = vunpack.c.l.b16 %v875
        %v915 = vunpack.c.l.b16 %v876
        %v916 = vunpack.c.l.b16 %v877
        %v917 = vunpack.c.l.b16 %v878
        %v918 = vunpack.c.l.b16 %v879
        %v919 = vunpack.c.l.b16 %v880
        %v920 = vunpack.c.l.b16 %v881
        %v921 = vunpack.c.l.b16 %v882
        %v922 = vunpack.c.l.b16 %v883
        %v923 = vunpack.c.l.b16 %v884
        %v924 = vunpack.c.l.b16 %v885
        %v925 = vunpack.c.l.b16 %v886
        %v926 = vpack.c.b16 %v911, %v910
        %v927 = vpack.c.b16 %v913, %v912
        %v928 = vpack.c.b16 %v915, %v914
        %v929 = vpack.c.b16 %v917, %v916
        %v930 = vpack.c.b16 %v919, %v918
        %v931 = vpack.c.b16 %v921, %v920
        %v932 = vpack.c.b16 %v923, %v922
        %v933 = vpack.c.b16 %v925, %v924
        %942 = vmatprep.subr.bf16.mxu0 0
        %943 = vmatpush1.bf16.msra.mxu0 %v926
        %944 = vmatprep.subr.bf16.mxu0 0
        %945 = vmatpush1.bf16.msra.mxu0 %v927
        %946 = vmatprep.subr.bf16.mxu0 0
        %947 = vmatpush1.bf16.msra.mxu0 %v928
        %948 = vmatprep.subr.bf16.mxu0 0
        %949 = vmatpush1.bf16.msra.mxu0 %v929
        %950 = vmatprep.subr.bf16.mxu0 0
        %951 = vmatpush1.bf16.msra.mxu0 %v930
        %952 = vmatprep.subr.bf16.mxu0 0
        %953 = vmatpush1.bf16.msra.mxu0 %v931
        %954 = vmatprep.subr.bf16.mxu0 0
        %955 = vmatpush1.bf16.msra.mxu0 %v932
        %956 = vmatprep.subr.bf16.mxu0 0
        %957 = vmatpush1.bf16.msra.mxu0 %v933
        %958 = vmatprep.subr.bf16.mxu0 0
        %959 = vmatpush1.bf16.msra.mxu0 0
        %960 = vmatprep.subr.bf16.mxu0 0
        %961 = vmatpush1.bf16.msra.mxu0 0
        %962 = vmatprep.subr.bf16.mxu0 0
        %963 = vmatpush1.bf16.msra.mxu0 0
        %964 = vmatprep.subr.bf16.mxu0 0
        %965 = vmatpush1.bf16.msra.mxu0 0
        %966 = vmatprep.subr.bf16.mxu0 0
        %967 = vmatpush1.bf16.msra.mxu0 0
        %968 = vmatprep.subr.bf16.mxu0 0
        %969 = vmatpush1.bf16.msra.mxu0 0
        %970 = vmatprep.subr.bf16.mxu0 0
        %971 = vmatpush1.bf16.msra.mxu0 0
        %972 = vmatprep.subr.bf16.mxu0 0
        %973 = vmatpush1.bf16.msra.mxu0 0
        %974 = vmatprep.mubr.bf16.mxu0 0
        %975 = vmatmul.mubr.bf16.gmra.mrb[0].mxu0 %v863
        %v976 = vpop.f32.mrb[0].mxu0
        %v977 = vadd.f32 %v892, %v976
        %v978 = vpop.f32.mrb[0].mxu0
        %v979 = vpop.f32.mrb[0].mxu0
        %v980 = vadd.f32 %v892, %v979
        %v981 = vpop.f32.mrb[0].mxu0
        %982 = vmatprep.mubr.bf16.mxu0 0
        %983 = vmatmul.mubr.bf16.gmra.mrb[0].mxu0 %v864
        %v984 = vpop.f32.mrb[0].mxu0
        %v985 = vadd.f32 %v892, %v984
        %v986 = vpop.f32.mrb[0].mxu0
        %v987 = vpop.f32.mrb[0].mxu0
        %v988 = vadd.f32 %v892, %v987
        %v989 = vpop.f32.mrb[0].mxu0
        %990 = vmatprep.mubr.bf16.mxu0 0
        %991 = vmatmul.mubr.bf16.gmra.mrb[0].mxu0 %v865
        %v992 = vpop.f32.mrb[0].mxu0
        %v993 = vadd.f32 %v892, %v992
        %v994 = vpop.f32.mrb[0].mxu0
        %v995 = vpop.f32.mrb[0].mxu0
        %v996 = vadd.f32 %v892, %v995
        %v997 = vpop.f32.mrb[0].mxu0
        %998 = vmatprep.mubr.bf16.mxu0 0
        %999 = vmatmul.mubr.bf16.gmra.mrb[0].mxu0 %v866
        %v1000 = vpop.f32.mrb[0].mxu0
        %v1001 = vadd.f32 %v892, %v1000
        %v1002 = vpop.f32.mrb[0].mxu0
        %v1003 = vpop.f32.mrb[0].mxu0
        %v1004 = vadd.f32 %v892, %v1003
        %v1005 = vpop.f32.mrb[0].mxu0
        %1006 = vmatprep.mubr.bf16.mxu0 0
        %1007 = vmatmul.mubr.bf16.gmra.mrb[0].mxu0 %v867
        %v1008 = vpop.f32.mrb[0].mxu0
        %v1009 = vadd.f32 %v892, %v1008
        %v1010 = vpop.f32.mrb[0].mxu0
        %v1011 = vpop.f32.mrb[0].mxu0
        %v1012 = vadd.f32 %v892, %v1011
        %v1013 = vpop.f32.mrb[0].mxu0
        %1014 = vmatprep.mubr.bf16.mxu0 0
        %1015 = vmatmul.mubr.bf16.gmra.mrb[0].mxu0 %v868
        %v1016 = vpop.f32.mrb[0].mxu0
        %v1017 = vadd.f32 %v892, %v1016
        %v1018 = vpop.f32.mrb[0].mxu0
        %v1019 = vpop.f32.mrb[0].mxu0
        %v1020 = vadd.f32 %v892, %v1019
        %v1021 = vpop.f32.mrb[0].mxu0
        %1022 = vmatprep.mubr.bf16.mxu0 0
        %1023 = vmatmul.mubr.bf16.gmra.mrb[0].mxu0 %v869
        %v1024 = vpop.f32.mrb[0].mxu0
        %v1025 = vadd.f32 %v892, %v1024
        %v1026 = vpop.f32.mrb[0].mxu0
        %v1027 = vpop.f32.mrb[0].mxu0
        %v1028 = vadd.f32 %v892, %v1027
        %v1029 = vpop.f32.mrb[0].mxu0
        %1030 = vmatprep.mubr.bf16.mxu0 0
        %1031 = vmatmul.mubr.bf16.gmra.mrb[0].mxu0 %v870
        %v1032 = vpop.f32.mrb[0].mxu0
        %v1033 = vadd.f32 %v892, %v1032
        %v1034 = vpop.f32.mrb[0].mxu0
        %v1035 = vpop.f32.mrb[0].mxu0
        %v1036 = vadd.f32 %v892, %v1035
        %v1037 = vpop.f32.mrb[0].mxu0
        %1038 = vdwg.mxu0
        %1039 = vst [vmem:[%s290] sm:$0xff] %v977
        %1040 = vst [vmem:[%s290 + $0x8] sm:$0xff] %v980
        %1041 = vst [vmem:[%s290 + $0x10] sm:$0xff] %v985
        %1042 = vst [vmem:[%s290 + $0x18] sm:$0xff] %v988
        %1043 = vst [vmem:[%s290 + $0x20] sm:$0xff] %v993
        %1044 = vst [vmem:[%s290 + $0x28] sm:$0xff] %v996
        %1045 = vst [vmem:[%s290 + $0x30] sm:$0xff] %v1001
        %1046 = vst [vmem:[%s290 + $0x38] sm:$0xff] %v1004
        %1047 = vst [vmem:[%s290 + $0x40] sm:$0xff] %v1009
        %1048 = vst [vmem:[%s290 + $0x48] sm:$0xff] %v1012
        %1049 = vst [vmem:[%s290 + $0x50] sm:$0xff] %v1017
        %1050 = vst [vmem:[%s290 + $0x58] sm:$0xff] %v1020
        %1051 = vst [vmem:[%s290 + $0x60] sm:$0xff] %v1025
        %1052 = vst [vmem:[%s290 + $0x68] sm:$0xff] %v1028
        %1053 = vst [vmem:[%s290 + $0x70] sm:$0xff] %v1033
        %1054 = vst [vmem:[%s290 + $0x78] sm:$0xff] %v1036
        %s1055 = sand.u32 %s157, 1
        %s1056 = scalar_lea.sflag [#allocation4], %s1055
        %s1057 = sand.u32 %s157, 1
        %s1058 = smul.addr %s1057, 128
        %s1059 = scalar_lea.vmem [#allocation8], %s1058
        // Predicated region
        $region53: #{tpu_custom_call.1} parent=39 // pred_check
          %p1060 = pneg %p167
        $region54: #{tpu_custom_call.1} parent=39 // pred_check_branch
          %1062 = sbr.rel (%p1060) target = $region56
        $region55: #{tpu_custom_call.1} parent=39 // pred_region
          %s1063 = smul.u32 16, %s28
          %s1065 = ssub.s32 2048, 2048
          %1066 = vsyncadd %s1056, %s1065
          %s1067 = smul.addr %s27, 32
          %s1068 = sadd.s32 %s1063, %s1067
          %s1069 = smul.addr %s1068, 128
          %s1070 = scalar_lea.hbm %s5, %s1069
          %s1071 = sshll.u32 %s1059, 4
          %s1072 = int_to_ptr.vmem [resolvable:$true] %s1071
          %1077 = dma.vmem_to_hbm [thread:$0]  %s1072, 2048, %s1070, %s1056, 128, 128, 8
        $region56: #{tpu_custom_call.1} parent=39 // pred_fallthru
          _
      $region40: #{tpu_custom_call.1} parent=5 // pred_fallthru
        _
      %p1078 = scmp.le.s32.totalorder 2, %s18
      // Predicated region
      $region57: #{tpu_custom_call.1} parent=5 // pred_check
        %p1079 = pneg %p1078
      $region58: #{tpu_custom_call.1} parent=5 // pred_check_branch
        %1081 = sbr.rel (%p1079) target = $region60
      $region59: #{tpu_custom_call.1} parent=5 // pred_region
        %s1082 = ssub.s32 %s18, 2
        // Predicated region
        $region61: #{tpu_custom_call.1} parent=59 // pred_check
          %p1083 = pneg %p173
        $region62: #{tpu_custom_call.1} parent=59 // pred_check_branch
          %1085 = sbr.rel (%p1083) target = $region64
        $region63: #{tpu_custom_call.1} parent=59 // pred_region
          %s1086 = sand.u32 %s158, 1
          %s1087 = scalar_lea.sflag [#allocation4], %s1086
          %s1088 = sand.u32 %s158, 1
          %s1089 = smul.addr %s1088, 128
          %s1090 = scalar_lea.vmem [#allocation8], %s1089
          %1091 = dma.done %s1087, 2048
        $region64: #{tpu_custom_call.1} parent=59 // pred_fallthru
          _
      $region60: #{tpu_custom_call.1} parent=5 // pred_fallthru
        _
    $region6: #{tpu_custom_call.1} parent=1 // loop_footer
      %s22 = sadd.s32 1, %s18
    $region7: #{tpu_custom_call.1} parent=1 // loop_footer_branch
      %17 = sbr.rel target = $region3
    $region8: #{tpu_custom_call.1} parent=1 // loop_exit
      _
    %1092 = vsyncpa [#allocation3], 1
    %s1093 = scalar_lea.sflag [#allocation3], 1
    %1094 = vsyncpa %s1093, 1
    %1095 = vsyncpa [#allocation6], 1
    %1096 = vsyncpa [#allocation4], 1
    %s1097 = scalar_lea.sflag [#allocation4], 1
    %1098 = vsyncpa %s1097, 1

</llo_original>
